<compile_context>
chip_gen: v6e
topology: v6e:2x2x1
jax: 0.10.0
libtpu: 0.0.40
codegen_flags: <defaults>
</compile_context>

<pallas_src>
import functools

import jax
import jax.numpy as jnp
from jax.experimental import pallas as pl
from jax.experimental.pallas import tpu as pltpu


# ---------------------------------------------------------------------------
# Kernel
# ---------------------------------------------------------------------------
def cross_mix_attention_kernel(
    hA_ref, hB_ref,          # (tm, Dp) activation tiles (storage dtype, e.g. bf16)
    wq_ref,                  # (Dp, Dp)   query weight  (storage dtype)
    wkv_ref,                 # (Dp, 2Dp)  fused [Wk | Wv] weight (storage dtype)
    consts_ref,              # (5, Dp)    rows: bq / bk / bv / gamma / beta (f32)
    o_ref,                   # (tm, Dp)   output tile
    *, d_true,               # true (unpadded) hidden dim
):
    tm, dp = hA_ref.shape

    hA = hA_ref[...]
    hB = hB_ref[...]
    hA_f32 = hA.astype(jnp.float32)

    consts = consts_ref[...]                      # already f32
    bq = consts[0:1, :]
    bk = consts[1:2, :]
    bv = consts[2:3, :]
    gamma = consts[3:4, :]
    beta = consts[4:5, :]

    # Projections on the MXU with f32 accumulation.  K/V share one matmul
    # (one weight push, one result drain).  Padded lanes of W / b are zero, so
    # q/k/v padded lanes are exactly zero.
    q = jnp.dot(hA, wq_ref[...], preferred_element_type=jnp.float32) + bq
    kv = jnp.dot(hB, wkv_ref[...], preferred_element_type=jnp.float32)
    k = kv[:, :dp] + bk        # lane-aligned split (dp is a 128-multiple)
    v = kv[:, dp:] + bv

    # Per-row scalar gate: sigmoid((Q . K) / sqrt(D)).  Padded lanes of q,k
    # are 0, so the full-lane XLU reduction equals the true-D reduction.
    scores = jnp.sum(q * k, axis=-1, keepdims=True) * (1.0 / (d_true ** 0.5))
    attended = jax.nn.sigmoid(scores) * v

    # LayerNorm(attended + h_A), eps = 1e-5, over the TRUE feature dim.
    # Padded lanes of x are exactly 0 (zero-padded inputs/weights/biases).
    x = attended + hA_f32
    inv_d = 1.0 / d_true
    mean = jnp.sum(x, axis=-1, keepdims=True) * inv_d
    xc = x - mean
    if d_true != dp:
        # Mask padded lanes before the variance sum (they hold -mean otherwise).
        lane_mask = jax.lax.broadcasted_iota(jnp.int32, (tm, dp), 1) < d_true
        xc = jnp.where(lane_mask, xc, 0.0)
    var = jnp.sum(xc * xc, axis=-1, keepdims=True) * inv_d
    normed = xc * jax.lax.rsqrt(var + 1e-5)       # EUP rsqrt

    # Dropout: identity in eval mode.
    o_ref[...] = (normed * gamma + beta).astype(o_ref.dtype)


# ---------------------------------------------------------------------------
# Wrapper
# ---------------------------------------------------------------------------
def _round_up(x, m):
    return (x + m - 1) // m * m


def _pad2d(x, rows, cols):
    r, c = x.shape
    if r == rows and c == cols:
        return x
    return jnp.pad(x, ((0, rows - r), (0, cols - c)))


def _pick_tm(n_rows, dp, in_bytes, out_bytes, *, tm_max, vmem_budget):
    """Largest row tile that fits the VMEM budget (v7x has only 64 MiB)."""
    # Single-buffered weights/consts (pl.Buffered(1)): Wq + fused Wkv + vectors.
    weight_bytes = 3 * dp * dp * in_bytes + 5 * dp * 4
    # Per row: double-buffered in/out tiles + ~6 f32 (tm, Dp) intermediates.
    per_row = 2 * dp * (2 * in_bytes + out_bytes) + 6 * dp * 4
    tm = max(16, min(tm_max, (vmem_budget - weight_bytes) // per_row))
    if tm >= 256:
        tm = (tm // 256) * 256      # fill MXU M dim (v6e/v7x 256x256 passes)
    else:
        tm = (tm // 16) * 16        # bf16 sublane-packing minimum
    # Never tile wider than the (row-padded) problem itself.
    return int(min(tm, _round_up(n_rows, 16)))


def cross_mix_attention(h_A, h_B, params, *,
                        storage_dtype=jnp.bfloat16,
                        tm_max=512,
                        vmem_budget=40 * 1024 * 1024):
    """h_A, h_B: (N, D). params: dict of f32 weights. Returns (N, D) in h_A.dtype."""
    N, D = h_A.shape
    Dp = _round_up(D, 128)                      # lane-dense feature dim
    in_bytes = jnp.dtype(storage_dtype).itemsize
    out_dtype = h_A.dtype
    out_bytes = jnp.dtype(out_dtype).itemsize

    tm = _pick_tm(N, Dp, in_bytes, out_bytes, tm_max=tm_max, vmem_budget=vmem_budget)
    Np = _round_up(N, tm)

    # Zero-pad rows to the tile and features to a 128 multiple; cast the big
    # operands (activations + weights) to the bf16 storage dtype.
    hA_p = _pad2d(h_A, Np, Dp).astype(storage_dtype)
    hB_p = _pad2d(h_B, Np, Dp).astype(storage_dtype)
    wq = _pad2d(params["wq"], Dp, Dp).astype(storage_dtype)
    wkv = jnp.concatenate([_pad2d(params["wk"], Dp, Dp),
                           _pad2d(params["wv"], Dp, Dp)], axis=1).astype(storage_dtype)
    consts = jnp.concatenate([_pad2d(params["bq"], 1, Dp),
                              _pad2d(params["bk"], 1, Dp),
                              _pad2d(params["bv"], 1, Dp),
                              _pad2d(params["gamma"], 1, Dp),
                              _pad2d(params["beta"], 1, Dp)], axis=0).astype(jnp.float32)

    row_spec = pl.BlockSpec((tm, Dp), lambda i: (i, 0))

    # Constant operands: single-buffered — constant index_map means no
    # re-fetch, and it halves their VMEM footprint (matters on v7x at big D).
    def const_spec(shape):
        return pl.BlockSpec(shape, lambda i: (0, 0), pipeline_mode=pl.Buffered(1))

    grid_spec = pltpu.PrefetchScalarGridSpec(
        num_scalar_prefetch=0,
        grid=(Np // tm,),
        in_specs=[
            row_spec, row_spec,            # h_A, h_B tiles
            const_spec((Dp, Dp)),          # Wq
            const_spec((Dp, 2 * Dp)),      # [Wk | Wv]
            const_spec((5, Dp)),           # bq / bk / bv / gamma / beta
        ],
        out_specs=row_spec,
    )

    kernel = functools.partial(cross_mix_attention_kernel, d_true=D)
    out = pl.pallas_call(
        kernel,
        out_shape=jax.ShapeDtypeStruct((Np, Dp), out_dtype),
        grid_spec=grid_spec,
        compiler_params=pltpu.CompilerParams(
            dimension_semantics=("parallel",),
            vmem_limit_bytes=48 * 1024 * 1024,
        ),
    )(hA_p, hB_p, wq, wkv, consts)

    return out[:N, :D]


# ---------------------------------------------------------------------------
# Parameter init matching the PyTorch module
# ---------------------------------------------------------------------------
def init_params(key, hidden_dim):
    """xavier_uniform weights, PyTorch-default uniform biases, LN gamma=1, beta=0."""
    kq, kk, kv, kbq, kbk, kbv = jax.random.split(key, 6)
    limit_w = jnp.sqrt(6.0 / (hidden_dim + hidden_dim))   # xavier_uniform
    limit_b = 1.0 / jnp.sqrt(jnp.float32(hidden_dim))     # nn.Linear default bias

    def w(k):
        # stored as (in, out) so the kernel computes x @ W (== x @ W_pt.T)
        return jax.random.uniform(k, (hidden_dim, hidden_dim),
                                  jnp.float32, -limit_w, limit_w)

    def b(k):
        return jax.random.uniform(k, (1, hidden_dim),
                                  jnp.float32, -limit_b, limit_b)

    return {
        "wq": w(kq), "wk": w(kk), "wv": w(kv),
        "bq": b(kbq), "bk": b(kbk), "bv": b(kbv),
        "gamma": jnp.ones((1, hidden_dim), jnp.float32),
        "beta": jnp.zeros((1, hidden_dim), jnp.float32),
    }


# ---------------------------------------------------------------------------
# Pure-JAX reference
# ---------------------------------------------------------------------------
def cross_mix_attention_ref(h_A, h_B, p, *, cast_dtype=None):
    """Reference forward pass. If cast_dtype is given, activations and weights
    are rounded through that dtype (to mirror the kernel's bf16 storage)."""
    if cast_dtype is not None:
        c = lambda a: a.astype(cast_dtype).astype(jnp.float32)
        h_A, h_B = c(h_A), c(h_B)
        wq, wk, wv = c(p["wq"]), c(p["wk"]), c(p["wv"])
    else:
        wq, wk, wv = p["wq"], p["wk"], p["wv"]
    q = h_A @ wq + p["bq"]
    k = h_B @ wk + p["bk"]
    v = h_B @ wv + p["bv"]
    d = q.shape[-1]
    scores = jnp.sum(q * k, axis=-1, keepdims=True) / jnp.sqrt(jnp.float32(d))
    attended = jax.nn.sigmoid(scores) * v
    x = attended + h_A
    mean = jnp.mean(x, -1, keepdims=True)
    var = jnp.mean((x - mean) ** 2, -1, keepdims=True)
    normed = (x - mean) * jax.lax.rsqrt(var + 1e-5)
    return normed * p["gamma"] + p["beta"]


if __name__ == "__main__":
    key = jax.random.PRNGKey(0)
    k_param, k_a, k_b = jax.random.split(key, 3)

    # Small demo shapes: 50 tokens, hidden_dim = 32 (exercises both the row
    # padding and the feature-dim padding to 128 lanes).
    N, D = 50, 32
    params = init_params(k_param, D)
    h_A = jax.random.normal(k_a, (N, D), jnp.float32)
    h_B = jax.random.normal(k_b, (N, D), jnp.float32)

    out = cross_mix_attention(h_A, h_B, params)
    out = jax.block_until_ready(out)
    assert out.shape == (N, D)

    # Compare against the reference with matching bf16 rounding of the inputs.
    ref = cross_mix_attention_ref(h_A, h_B, params, cast_dtype=jnp.bfloat16)
    assert jnp.allclose(out, ref, atol=1e-2, rtol=1e-2), "mismatch vs reference"

    print("KERNEL_OK")
</pallas_src>

<mosaic_0001>
module attributes {stable_mosaic.version = 11 : i64} {
  func.func @cross_mix_attention_kernel(%arg0: i32, %arg1: memref<64x128xbf16, #tpu.memory_space<vmem>>, %arg2: memref<64x128xbf16, #tpu.memory_space<vmem>>, %arg3: memref<128x128xbf16, #tpu.memory_space<vmem>>, %arg4: memref<128x256xbf16, #tpu.memory_space<vmem>>, %arg5: memref<5x128xf32, #tpu.memory_space<vmem>>, %arg6: memref<64x128xf32, #tpu.memory_space<vmem>>) attributes {dimension_semantics = [#tpu.dimension_semantics<parallel>], iteration_bounds = array<i64: 1>, scalar_prefetch = 0 : i64, scratch_operands = 0 : i64, tpu.core_type = #tpu.core_type<tc>, window_params = [{transform_indices = @transform_0, window_bounds = array<i64: 64, 128>}, {transform_indices = @transform_1, window_bounds = array<i64: 64, 128>}, {pipeline_mode = #tpu.pipeline_mode<synchronous>, transform_indices = @transform_2, window_bounds = array<i64: 128, 128>}, {pipeline_mode = #tpu.pipeline_mode<synchronous>, transform_indices = @transform_3, window_bounds = array<i64: 128, 256>}, {pipeline_mode = #tpu.pipeline_mode<synchronous>, transform_indices = @transform_4, window_bounds = array<i64: 5, 128>}, {transform_indices = @transform_5, window_bounds = array<i64: 64, 128>}]} {
    %c0 = arith.constant 0 : index
    %c0_0 = arith.constant 0 : index
    %0 = vector.load %arg1[%c0, %c0_0] : memref<64x128xbf16, #tpu.memory_space<vmem>>, vector<64x128xbf16>
    %c0_1 = arith.constant 0 : index
    %c0_2 = arith.constant 0 : index
    %1 = vector.load %arg2[%c0_1, %c0_2] : memref<64x128xbf16, #tpu.memory_space<vmem>>, vector<64x128xbf16>
    %2 = arith.extf %0 : vector<64x128xbf16> to vector<64x128xf32>
    %c0_3 = arith.constant 0 : index
    %c0_4 = arith.constant 0 : index
    %3 = vector.load %arg5[%c0_3, %c0_4] : memref<5x128xf32, #tpu.memory_space<vmem>>, vector<5x128xf32>
    %4 = vector.extract_strided_slice %3 {offsets = [0, 0], sizes = [1, 128], strides = [1, 1]} : vector<5x128xf32> to vector<1x128xf32>
    %5 = vector.extract_strided_slice %3 {offsets = [1, 0], sizes = [1, 128], strides = [1, 1]} : vector<5x128xf32> to vector<1x128xf32>
    %6 = vector.extract_strided_slice %3 {offsets = [2, 0], sizes = [1, 128], strides = [1, 1]} : vector<5x128xf32> to vector<1x128xf32>
    %7 = vector.extract_strided_slice %3 {offsets = [3, 0], sizes = [1, 128], strides = [1, 1]} : vector<5x128xf32> to vector<1x128xf32>
    %8 = vector.extract_strided_slice %3 {offsets = [4, 0], sizes = [1, 128], strides = [1, 1]} : vector<5x128xf32> to vector<1x128xf32>
    %c0_5 = arith.constant 0 : index
    %c0_6 = arith.constant 0 : index
    %9 = vector.load %arg3[%c0_5, %c0_6] : memref<128x128xbf16, #tpu.memory_space<vmem>>, vector<128x128xbf16>
    %cst = arith.constant dense<0.000000e+00> : vector<64x128xf32>
    %10 = tpu.matmul %0, %9, %cst {dimension_numbers = #tpu.dot_dimension_numbers<[1], [0], [0], [1], [0, 0, 1, 1], [], []>} : vector<64x128xbf16>, vector<128x128xbf16>, vector<64x128xf32> -> vector<64x128xf32>
    %11 = vector.broadcast %4 : vector<1x128xf32> to vector<64x128xf32>
    %12 = arith.addf %10, %11 : vector<64x128xf32>
    %c0_7 = arith.constant 0 : index
    %c0_8 = arith.constant 0 : index
    %13 = vector.load %arg4[%c0_7, %c0_8] : memref<128x256xbf16, #tpu.memory_space<vmem>>, vector<128x256xbf16>
    %cst_9 = arith.constant dense<0.000000e+00> : vector<64x256xf32>
    %14 = tpu.matmul %1, %13, %cst_9 {dimension_numbers = #tpu.dot_dimension_numbers<[1], [0], [0], [1], [0, 0, 1, 1], [], []>} : vector<64x128xbf16>, vector<128x256xbf16>, vector<64x256xf32> -> vector<64x256xf32>
    %15 = vector.extract_strided_slice %14 {offsets = [0, 0], sizes = [64, 128], strides = [1, 1]} : vector<64x256xf32> to vector<64x128xf32>
    %16 = vector.broadcast %5 : vector<1x128xf32> to vector<64x128xf32>
    %17 = arith.addf %15, %16 : vector<64x128xf32>
    %18 = vector.extract_strided_slice %14 {offsets = [0, 128], sizes = [64, 128], strides = [1, 1]} : vector<64x256xf32> to vector<64x128xf32>
    %19 = vector.broadcast %6 : vector<1x128xf32> to vector<64x128xf32>
    %20 = arith.addf %18, %19 : vector<64x128xf32>
    %21 = arith.mulf %12, %17 : vector<64x128xf32>
    %cst_10 = arith.constant dense<0.000000e+00> : vector<64xf32>
    %22 = vector.multi_reduction <add>, %21, %cst_10 [1] : vector<64x128xf32> to vector<64xf32>
    %23 = vector.shape_cast %22 : vector<64xf32> to vector<64x1xf32>
    %cst_11 = arith.constant 0.176776692 : f32
    %24 = vector.broadcast %cst_11 : f32 to vector<64x1xf32>
    %25 = arith.mulf %23, %24 : vector<64x1xf32>
    %26 = arith.negf %25 : vector<64x1xf32>
    %27 = math.exp %26 : vector<64x1xf32>
    %cst_12 = arith.constant 1.000000e+00 : f32
    %28 = vector.broadcast %cst_12 : f32 to vector<64x1xf32>
    %29 = arith.addf %28, %27 : vector<64x1xf32>
    %30 = arith.divf %28, %29 : vector<64x1xf32>
    %31 = vector.broadcast %30 : vector<64x1xf32> to vector<64x128xf32>
    %32 = arith.mulf %31, %20 : vector<64x128xf32>
    %33 = arith.addf %32, %2 : vector<64x128xf32>
    %cst_13 = arith.constant dense<0.000000e+00> : vector<64xf32>
    %34 = vector.multi_reduction <add>, %33, %cst_13 [1] : vector<64x128xf32> to vector<64xf32>
    %35 = vector.shape_cast %34 : vector<64xf32> to vector<64x1xf32>
    %cst_14 = arith.constant 3.125000e-02 : f32
    %36 = vector.broadcast %cst_14 : f32 to vector<64x1xf32>
    %37 = arith.mulf %35, %36 : vector<64x1xf32>
    %38 = vector.broadcast %37 : vector<64x1xf32> to vector<64x128xf32>
    %39 = arith.subf %33, %38 : vector<64x128xf32>
    %40 = tpu.iota {dimensions = array<i32: 1>} : vector<64x128xi32>
    %c32_i32 = arith.constant 32 : i32
    %41 = vector.broadcast %c32_i32 : i32 to vector<64x128xi32>
    %42 = arith.cmpi slt, %40, %41 : vector<64x128xi32>
    %cst_15 = arith.constant 0.000000e+00 : f32
    %43 = vector.broadcast %cst_15 : f32 to vector<64x128xf32>
    %44 = arith.select %42, %39, %43 : vector<64x128xi1>, vector<64x128xf32>
    %45 = arith.mulf %44, %44 : vector<64x128xf32>
    %cst_16 = arith.constant dense<0.000000e+00> : vector<64xf32>
    %46 = vector.multi_reduction <add>, %45, %cst_16 [1] : vector<64x128xf32> to vector<64xf32>
    %47 = vector.shape_cast %46 : vector<64xf32> to vector<64x1xf32>
    %cst_17 = arith.constant 3.125000e-02 : f32
    %48 = vector.broadcast %cst_17 : f32 to vector<64x1xf32>
    %49 = arith.mulf %47, %48 : vector<64x1xf32>
    %cst_18 = arith.constant 9.99999974E-6 : f32
    %50 = vector.broadcast %cst_18 : f32 to vector<64x1xf32>
    %51 = arith.addf %49, %50 : vector<64x1xf32>
    %52 = math.rsqrt %51 : vector<64x1xf32>
    %53 = vector.broadcast %52 : vector<64x1xf32> to vector<64x128xf32>
    %54 = arith.mulf %44, %53 : vector<64x128xf32>
    %55 = vector.broadcast %7 : vector<1x128xf32> to vector<64x128xf32>
    %56 = arith.mulf %54, %55 : vector<64x128xf32>
    %57 = vector.broadcast %8 : vector<1x128xf32> to vector<64x128xf32>
    %58 = arith.addf %56, %57 : vector<64x128xf32>
    %c0_19 = arith.constant 0 : index
    %c0_20 = arith.constant 0 : index
    %59 = vector.load %arg6[%c0_19, %c0_20] : memref<64x128xf32, #tpu.memory_space<vmem>>, vector<64x128xf32>
    tpu.vector_store %arg6[%c0_19, %c0_20], %58 {strides = array<i32>} : memref<64x128xf32, #tpu.memory_space<vmem>>, vector<64x128xf32>,
    return
  }
  func.func @transform_0(%arg0: i32) -> (i32, i32) {
    %c0_i32 = arith.constant 0 : i32
    %c0_i32_0 = arith.constant 0 : i32
    return %arg0, %c0_i32 : i32, i32
  }
  func.func @transform_1(%arg0: i32) -> (i32, i32) {
    %c0_i32 = arith.constant 0 : i32
    %c0_i32_0 = arith.constant 0 : i32
    return %arg0, %c0_i32 : i32, i32
  }
  func.func @transform_2(%arg0: i32) -> (i32, i32) {
    %c0_i32 = arith.constant 0 : i32
    %c0_i32_0 = arith.constant 0 : i32
    %c0_i32_1 = arith.constant 0 : i32
    return %c0_i32, %c0_i32_0 : i32, i32
  }
  func.func @transform_3(%arg0: i32) -> (i32, i32) {
    %c0_i32 = arith.constant 0 : i32
    %c0_i32_0 = arith.constant 0 : i32
    %c0_i32_1 = arith.constant 0 : i32
    return %c0_i32, %c0_i32_0 : i32, i32
  }
  func.func @transform_4(%arg0: i32) -> (i32, i32) {
    %c0_i32 = arith.constant 0 : i32
    %c0_i32_0 = arith.constant 0 : i32
    %c0_i32_1 = arith.constant 0 : i32
    return %c0_i32, %c0_i32_0 : i32, i32
  }
  func.func @transform_5(%arg0: i32) -> (i32, i32) {
    %c0_i32 = arith.constant 0 : i32
    %c0_i32_0 = arith.constant 0 : i32
    return %arg0, %c0_i32 : i32, i32
  }
}

</mosaic_0001>

<llo_original>
// kernel: tpu_custom_call.1
$region0: #{tpu_custom_call.1}
  #allocation0 [shape = 'u32[]', space=smem, size = 0x4, offset = 0x4, fixed_abs, tag = 'smem constant byte address 0x4 - core index']
  #allocation1 [shape = 'u32[144,128]{1,0:T(1,128)}', space=vmem, size = 0x12000, scoped, tag = 'internal scratch']
  %s0 = inlined_call_operand.hbm [shape: bf16[64,128], index: 0, kind: input, shape index: {}]
  %s1 = inlined_call_operand.hbm [shape: bf16[64,128], index: 1, kind: input, shape index: {}]
  %s2 = inlined_call_operand.hbm [shape: bf16[128,128], index: 2, kind: input, shape index: {}]
  %s3 = inlined_call_operand.hbm [shape: bf16[128,256], index: 3, kind: input, shape index: {}]
  %s4 = inlined_call_operand.hbm [shape: f32[5,128], index: 4, kind: input, shape index: {}]
  %s5 = inlined_call_operand.hbm [shape: f32[64,128], index: 5, kind: output, shape index: {}]
  %s6 = sld [smem:[#allocation0]]
  $region50: #{tpu_custom_call.1} parent=0
    _
  %s8 = ssub.s32 1, %s6
  %s9 = scalar_select 0, %s8, %s6
  $region1: #{tpu_custom_call.1} parent=0
    #allocation2 [shape = 'u8[16384]{0}', space=vmem, size = 0x4000, scoped, tag = 'input window, operand 0, single buffered']
    #allocation3 [shape = 's32[1]{0}', space=sflag, size = 0x4, scoped, tag = 'scoped memory for tpu_custom_call.1']
    #allocation4 [shape = 's32[1]{0}', space=sflag, size = 0x4, scoped, tag = 'scoped memory for tpu_custom_call.1']
    #allocation5 [shape = 'u8[16384]{0}', space=vmem, size = 0x4000, scoped, tag = 'input window, operand 1, single buffered']
    #allocation6 [shape = 's32[1]{0}', space=sflag, size = 0x4, scoped, tag = 'scoped memory for tpu_custom_call.1']
    #allocation7 [shape = 'u8[32768]{0}', space=vmem, size = 0x8000, scoped, tag = 'input window, operand 2, single buffered']
    #allocation8 [shape = 'u8[65536]{0}', space=vmem, size = 0x10000, scoped, tag = 'input window, operand 3, single buffered']
    #allocation9 [shape = 's32[1]{0}', space=sflag, size = 0x4, scoped, tag = 'scoped memory for tpu_custom_call.1']
    #allocation10 [shape = 'u8[4096]{0}', space=vmem, size = 0x1000, scoped, tag = 'input window, operand 4, single buffered']
    #allocation11 [shape = 'u8[32768]{0}', space=vmem, size = 0x8000, scoped, tag = 'output window, operand 0, single buffered']
    %10 = vsyncpa [#allocation3], 0
    %11 = vsyncpa [#allocation6], 0
    %12 = vsyncpa [#allocation9], 0
    %13 = vsyncpa [#allocation4], 0
    // Predicated region
    $region2: #{tpu_custom_call.1} parent=1 // pred_check
      _
    $region3: #{tpu_custom_call.1} parent=1 // pred_check_branch
      %15 = sbr.rel (0) target = $region5
    $region4: #{tpu_custom_call.1} parent=1 // pred_region
      %s17 = ssub.s32 512, 512
      %18 = vsyncadd [#allocation3], %s17
      %s19 = sshll.u32 [#allocation2], 4
      %s20 = int_to_ptr.vmem [resolvable:$true] %s19
      %25 = dma.hbm_to_vmem [thread:$0]  %s0, 512, %s20, [#allocation3], 64, 64, 4
    $region5: #{tpu_custom_call.1} parent=1 // pred_fallthru
      _
    // Predicated region
    $region6: #{tpu_custom_call.1} parent=1 // pred_check
      _
    $region7: #{tpu_custom_call.1} parent=1 // pred_check_branch
      %27 = sbr.rel (0) target = $region9
    $region8: #{tpu_custom_call.1} parent=1 // pred_region
      %s29 = ssub.s32 512, 512
      %30 = vsyncadd [#allocation6], %s29
      %s31 = sshll.u32 [#allocation5], 4
      %s32 = int_to_ptr.vmem [resolvable:$true] %s31
      %37 = dma.hbm_to_vmem [thread:$0]  %s1, 512, %s32, [#allocation6], 64, 64, 4
    $region9: #{tpu_custom_call.1} parent=1 // pred_fallthru
      _
    // Predicated region
    $region10: #{tpu_custom_call.1} parent=1 // pred_check
      _
    $region11: #{tpu_custom_call.1} parent=1 // pred_check_branch
      %39 = sbr.rel (0) target = $region13
    $region12: #{tpu_custom_call.1} parent=1 // pred_region
      %s41 = ssub.s32 1024, 1024
      %42 = vsyncadd [#allocation6], %s41
      %s43 = sshll.u32 [#allocation7], 4
      %s44 = int_to_ptr.vmem [resolvable:$true] %s43
      %49 = dma.hbm_to_vmem [thread:$0]  %s2, 1024, %s44, [#allocation6], 64, 64, 4
    $region13: #{tpu_custom_call.1} parent=1 // pred_fallthru
      _
    // Predicated region
    $region14: #{tpu_custom_call.1} parent=1 // pred_check
      _
    $region15: #{tpu_custom_call.1} parent=1 // pred_check_branch
      %51 = sbr.rel (0) target = $region17
    $region16: #{tpu_custom_call.1} parent=1 // pred_region
      %s53 = ssub.s32 2048, 2048
      %54 = vsyncadd [#allocation9], %s53
      %s55 = sshll.u32 [#allocation8], 4
      %s56 = int_to_ptr.vmem [resolvable:$true] %s55
      %61 = dma.hbm_to_vmem [thread:$0]  %s3, 2048, %s56, [#allocation9], 128, 128, 8
    $region17: #{tpu_custom_call.1} parent=1 // pred_fallthru
      _
    // Predicated region
    $region18: #{tpu_custom_call.1} parent=1 // pred_check
      _
    $region19: #{tpu_custom_call.1} parent=1 // pred_check_branch
      %63 = sbr.rel (0) target = $region21
    $region20: #{tpu_custom_call.1} parent=1 // pred_region
      %s65 = ssub.s32 128, 128
      %66 = vsyncadd [#allocation9], %s65
      %s68 = sshll.u32 [#allocation10], 4
      %s69 = int_to_ptr.vmem [resolvable:$true] %s68
      %71 = dma.hbm_to_vmem [thread:$0]  %s4, 128, %s69, [#allocation9]
    $region21: #{tpu_custom_call.1} parent=1 // pred_fallthru
      _
    // Predicated region
    $region22: #{tpu_custom_call.1} parent=1 // pred_check
      _
    $region23: #{tpu_custom_call.1} parent=1 // pred_check_branch
      %73 = sbr.rel (0) target = $region25
    $region24: #{tpu_custom_call.1} parent=1 // pred_region
      %74 = dma.done [#allocation3], 512
    $region25: #{tpu_custom_call.1} parent=1 // pred_fallthru
      _
    // Predicated region
    $region26: #{tpu_custom_call.1} parent=1 // pred_check
      _
    $region27: #{tpu_custom_call.1} parent=1 // pred_check_branch
      %76 = sbr.rel (0) target = $region29
    $region28: #{tpu_custom_call.1} parent=1 // pred_region
      %77 = dma.done [#allocation6], 512
    $region29: #{tpu_custom_call.1} parent=1 // pred_fallthru
      _
    // Predicated region
    $region30: #{tpu_custom_call.1} parent=1 // pred_check
      _
    $region31: #{tpu_custom_call.1} parent=1 // pred_check_branch
      %79 = sbr.rel (0) target = $region33
    $region32: #{tpu_custom_call.1} parent=1 // pred_region
      %80 = dma.done [#allocation6], 1024
    $region33: #{tpu_custom_call.1} parent=1 // pred_fallthru
      _
    // Predicated region
    $region34: #{tpu_custom_call.1} parent=1 // pred_check
      _
    $region35: #{tpu_custom_call.1} parent=1 // pred_check_branch
      %82 = sbr.rel (0) target = $region37
    $region36: #{tpu_custom_call.1} parent=1 // pred_region
      %83 = dma.done [#allocation9], 2048
    $region37: #{tpu_custom_call.1} parent=1 // pred_fallthru
      _
    // Predicated region
    $region38: #{tpu_custom_call.1} parent=1 // pred_check
      _
    $region39: #{tpu_custom_call.1} parent=1 // pred_check_branch
      %85 = sbr.rel (0) target = $region41
    $region40: #{tpu_custom_call.1} parent=1 // pred_region
      %86 = dma.done [#allocation9], 128
    $region41: #{tpu_custom_call.1} parent=1 // pred_fallthru
      _
    %v88 = vld [vmem:[#allocation2] sm:$0xf]
    %v89 = vld [vmem:[#allocation2 + $0x4] sm:$0xf]
    %v90 = vld [vmem:[#allocation2 + $0x8] sm:$0xf]
    %v91 = vld [vmem:[#allocation2 + $0xc] sm:$0xf]
    %v92 = vld [vmem:[#allocation2 + $0x10] sm:$0xf]
    %v93 = vld [vmem:[#allocation2 + $0x14] sm:$0xf]
    %v94 = vld [vmem:[#allocation2 + $0x18] sm:$0xf]
    %v95 = vld [vmem:[#allocation2 + $0x1c] sm:$0xf]
    %v96 = vld [vmem:[#allocation5] sm:$0xf]
    %v97 = vld [vmem:[#allocation5 + $0x4] sm:$0xf]
    %v98 = vld [vmem:[#allocation5 + $0x8] sm:$0xf]
    %v99 = vld [vmem:[#allocation5 + $0xc] sm:$0xf]
    %v100 = vld [vmem:[#allocation5 + $0x10] sm:$0xf]
    %v101 = vld [vmem:[#allocation5 + $0x14] sm:$0xf]
    %v102 = vld [vmem:[#allocation5 + $0x18] sm:$0xf]
    %v103 = vld [vmem:[#allocation5 + $0x1c] sm:$0xf]
    %v104 = vunpack.c.l.bf16 %v88
    %v105 = vunpack.c.l.bf16 %v89
    %v106 = vunpack.c.l.bf16 %v90
    %v107 = vunpack.c.l.bf16 %v91
    %v108 = vunpack.c.l.bf16 %v92
    %v109 = vunpack.c.l.bf16 %v93
    %v110 = vunpack.c.l.bf16 %v94
    %v111 = vunpack.c.l.bf16 %v95
    %v112 = vld [vmem:[#allocation10] sm:$0x1f]
    %v113 = vld [vmem:[#allocation7] sm:$0xf]
    %v114 = vld [vmem:[#allocation7 + $0x4] sm:$0xf]
    %v115 = vld [vmem:[#allocation7 + $0x8] sm:$0xf]
    %v116 = vld [vmem:[#allocation7 + $0xc] sm:$0xf]
    %v117 = vld [vmem:[#allocation7 + $0x10] sm:$0xf]
    %v118 = vld [vmem:[#allocation7 + $0x14] sm:$0xf]
    %v119 = vld [vmem:[#allocation7 + $0x18] sm:$0xf]
    %v120 = vld [vmem:[#allocation7 + $0x1c] sm:$0xf]
    %v121 = vld [vmem:[#allocation7 + $0x20] sm:$0xf]
    %v122 = vld [vmem:[#allocation7 + $0x24] sm:$0xf]
    %v123 = vld [vmem:[#allocation7 + $0x28] sm:$0xf]
    %v124 = vld [vmem:[#allocation7 + $0x2c] sm:$0xf]
    %v125 = vld [vmem:[#allocation7 + $0x30] sm:$0xf]
    %v126 = vld [vmem:[#allocation7 + $0x34] sm:$0xf]
    %v127 = vld [vmem:[#allocation7 + $0x38] sm:$0xf]
    %v128 = vld [vmem:[#allocation7 + $0x3c] sm:$0xf]
    %v129 = vlaneseq
    %v130 = vshrl.u32 %v129, 7
    %v131 = vsub.s32 0, %v130
    %v132 = vrot.slane %v112, %v131
    %v141 = vunpack.c.l.b16 %v88
    %v142 = vunpack.c.l.b16 %v89
    %v143 = vunpack.c.l.b16 %v90
    %v144 = vunpack.c.l.b16 %v91
    %v145 = vunpack.c.l.b16 %v92
    %v146 = vunpack.c.l.b16 %v93
    %v147 = vunpack.c.l.b16 %v94
    %v148 = vunpack.c.l.b16 %v95
    %v149 = vpack.c.b16 %v142, %v141
    %v150 = vpack.c.b16 %v144, %v143
    %v151 = vpack.c.b16 %v146, %v145
    %v152 = vpack.c.b16 %v148, %v147
    %v173 = vunpack.c.l.b16 %v113
    %v174 = vunpack.c.l.b16 %v114
    %v175 = vunpack.c.l.b16 %v115
    %v176 = vunpack.c.l.b16 %v116
    %v177 = vunpack.c.l.b16 %v117
    %v178 = vunpack.c.l.b16 %v118
    %v179 = vunpack.c.l.b16 %v119
    %v180 = vunpack.c.l.b16 %v120
    %v181 = vunpack.c.l.b16 %v121
    %v182 = vunpack.c.l.b16 %v122
    %v183 = vunpack.c.l.b16 %v123
    %v184 = vunpack.c.l.b16 %v124
    %v185 = vunpack.c.l.b16 %v125
    %v186 = vunpack.c.l.b16 %v126
    %v187 = vunpack.c.l.b16 %v127
    %v188 = vunpack.c.l.b16 %v128
    %v189 = vpack.c.b16 %v174, %v173
    %v190 = vpack.c.b16 %v176, %v175
    %v191 = vpack.c.b16 %v178, %v177
    %v192 = vpack.c.b16 %v180, %v179
    %v193 = vpack.c.b16 %v182, %v181
    %v194 = vpack.c.b16 %v184, %v183
    %v195 = vpack.c.b16 %v186, %v185
    %v196 = vpack.c.b16 %v188, %v187
    %205 = vmatprep.subr.bf16.mxu0 0
    %206 = vmatpush1.bf16.msra.mxu0 %v196
    %207 = vmatprep.subr.bf16.mxu0 0
    %208 = vmatpush1.bf16.msra.mxu0 %v195
    %209 = vmatprep.subr.bf16.mxu0 0
    %210 = vmatpush1.bf16.msra.mxu0 %v194
    %211 = vmatprep.subr.bf16.mxu0 0
    %212 = vmatpush1.bf16.msra.mxu0 %v193
    %213 = vmatprep.subr.bf16.mxu0 0
    %214 = vmatpush1.bf16.msra.mxu0 %v192
    %215 = vmatprep.subr.bf16.mxu0 0
    %216 = vmatpush1.bf16.msra.mxu0 %v191
    %217 = vmatprep.subr.bf16.mxu0 0
    %218 = vmatpush1.bf16.msra.mxu0 %v190
    %219 = vmatprep.subr.bf16.mxu0 0
    %220 = vmatpush1.bf16.msra.mxu0 %v189
    %221 = vmatprep.subr.bf16.mxu0 0
    %222 = vmatpush2.bf16.msra.mxu0 0
    %223 = vmatprep.subr.bf16.mxu0 0
    %224 = vmatpush2.bf16.msra.mxu0 0
    %225 = vmatprep.subr.bf16.mxu0 0
    %226 = vmatpush2.bf16.msra.mxu0 0
    %227 = vmatprep.subr.bf16.mxu0 0
    %228 = vmatpush2.bf16.msra.mxu0 0
    %229 = vmatprep.subr.bf16.mxu0 0
    %230 = vmatpush2.bf16.msra.mxu0 0
    %231 = vmatprep.subr.bf16.mxu0 0
    %232 = vmatpush2.bf16.msra.mxu0 0
    %233 = vmatprep.subr.bf16.mxu0 0
    %234 = vmatpush2.bf16.msra.mxu0 0
    %235 = vmatprep.subr.bf16.mxu0 0
    %236 = vmatpush2.bf16.msra.mxu0 0
    %237 = vmatprep.mubr.bf16.mxu0 0
    %238 = vmatmul.mubr.bf16.gmra.mxu0 %v149
    %v239 = vpop.f32.mrf.mxu0
    %v240 = vadd.f32 %v132, %v239
    %v241 = vpop.f32.mrf.mxu0
    %v242 = vpop.f32.mrf.mxu0
    %v243 = vadd.f32 %v132, %v242
    %v244 = vpop.f32.mrf.mxu0
    %245 = vmatprep.mubr.bf16.mxu0 0
    %246 = vmatmul.mubr.bf16.gmra.mxu0 %v150
    %v247 = vpop.f32.mrf.mxu0
    %v248 = vadd.f32 %v132, %v247
    %v249 = vpop.f32.mrf.mxu0
    %v250 = vpop.f32.mrf.mxu0
    %v251 = vadd.f32 %v132, %v250
    %v252 = vpop.f32.mrf.mxu0
    %253 = vmatprep.mubr.bf16.mxu0 0
    %254 = vmatmul.mubr.bf16.gmra.mxu0 %v151
    %v255 = vpop.f32.mrf.mxu0
    %v256 = vadd.f32 %v132, %v255
    %v257 = vpop.f32.mrf.mxu0
    %v258 = vpop.f32.mrf.mxu0
    %v259 = vadd.f32 %v132, %v258
    %v260 = vpop.f32.mrf.mxu0
    %261 = vmatprep.mubr.bf16.mxu0 0
    %262 = vmatmul.mubr.bf16.gmra.mxu0 %v152
    %v263 = vpop.f32.mrf.mxu0
    %v264 = vadd.f32 %v132, %v263
    %v265 = vpop.f32.mrf.mxu0
    %v266 = vpop.f32.mrf.mxu0
    %v267 = vadd.f32 %v132, %v266
    %v268 = vpop.f32.mrf.mxu0
    %269 = vdwg.mxu0
    %v270 = vld [vmem:[#allocation8] sm:$0xff]
    %v271 = vld [vmem:[#allocation8 + $0x8] sm:$0xff]
    %v272 = vld [vmem:[#allocation8 + $0x10] sm:$0xff]
    %v273 = vld [vmem:[#allocation8 + $0x18] sm:$0xff]
    %v274 = vld [vmem:[#allocation8 + $0x20] sm:$0xff]
    %v275 = vld [vmem:[#allocation8 + $0x28] sm:$0xff]
    %v276 = vld [vmem:[#allocation8 + $0x30] sm:$0xff]
    %v277 = vld [vmem:[#allocation8 + $0x38] sm:$0xff]
    %v278 = vld [vmem:[#allocation8 + $0x40] sm:$0xff]
    %v279 = vld [vmem:[#allocation8 + $0x48] sm:$0xff]
    %v280 = vld [vmem:[#allocation8 + $0x50] sm:$0xff]
    %v281 = vld [vmem:[#allocation8 + $0x58] sm:$0xff]
    %v282 = vld [vmem:[#allocation8 + $0x60] sm:$0xff]
    %v283 = vld [vmem:[#allocation8 + $0x68] sm:$0xff]
    %v284 = vld [vmem:[#allocation8 + $0x70] sm:$0xff]
    %v285 = vld [vmem:[#allocation8 + $0x78] sm:$0xff]
    %v294 = vunpack.c.l.b16 %v96
    %v295 = vunpack.c.l.b16 %v97
    %v296 = vunpack.c.l.b16 %v98
    %v297 = vunpack.c.l.b16 %v99
    %v298 = vunpack.c.l.b16 %v100
    %v299 = vunpack.c.l.b16 %v101
    %v300 = vunpack.c.l.b16 %v102
    %v301 = vunpack.c.l.b16 %v103
    %v302 = vpack.c.b16 %v295, %v294
    %v303 = vpack.c.b16 %v297, %v296
    %v304 = vpack.c.b16 %v299, %v298
    %v305 = vpack.c.b16 %v301, %v300
    %v326 = vunpack.c.l.b16 %v270
    %v327 = vunpack.c.h.b16 %v270
    %v328 = vunpack.c.l.b16 %v271
    %v329 = vunpack.c.h.b16 %v271
    %v330 = vunpack.c.l.b16 %v272
    %v331 = vunpack.c.h.b16 %v272
    %v332 = vunpack.c.l.b16 %v273
    %v333 = vunpack.c.h.b16 %v273
    %v334 = vunpack.c.l.b16 %v274
    %v335 = vunpack.c.h.b16 %v274
    %v336 = vunpack.c.l.b16 %v275
    %v337 = vunpack.c.h.b16 %v275
    %v338 = vunpack.c.l.b16 %v276
    %v339 = vunpack.c.h.b16 %v276
    %v340 = vunpack.c.l.b16 %v277
    %v341 = vunpack.c.h.b16 %v277
    %v342 = vunpack.c.l.b16 %v278
    %v343 = vunpack.c.h.b16 %v278
    %v344 = vunpack.c.l.b16 %v279
    %v345 = vunpack.c.h.b16 %v279
    %v346 = vunpack.c.l.b16 %v280
    %v347 = vunpack.c.h.b16 %v280
    %v348 = vunpack.c.l.b16 %v281
    %v349 = vunpack.c.h.b16 %v281
    %v350 = vunpack.c.l.b16 %v282
    %v351 = vunpack.c.h.b16 %v282
    %v352 = vunpack.c.l.b16 %v283
    %v353 = vunpack.c.h.b16 %v283
    %v354 = vunpack.c.l.b16 %v284
    %v355 = vunpack.c.h.b16 %v284
    %v356 = vunpack.c.l.b16 %v285
    %v357 = vunpack.c.h.b16 %v285
    %v358 = vpack.c.b16 %v328, %v326
    %v359 = vpack.c.b16 %v329, %v327
    %v360 = vpack.c.b16 %v332, %v330
    %v361 = vpack.c.b16 %v333, %v331
    %v362 = vpack.c.b16 %v336, %v334
    %v363 = vpack.c.b16 %v337, %v335
    %v364 = vpack.c.b16 %v340, %v338
    %v365 = vpack.c.b16 %v341, %v339
    %v366 = vpack.c.b16 %v344, %v342
    %v367 = vpack.c.b16 %v345, %v343
    %v368 = vpack.c.b16 %v348, %v346
    %v369 = vpack.c.b16 %v349, %v347
    %v370 = vpack.c.b16 %v352, %v350
    %v371 = vpack.c.b16 %v353, %v351
    %v372 = vpack.c.b16 %v356, %v354
    %v373 = vpack.c.b16 %v357, %v355
    %390 = vmatprep.subr.bf16.mxu0 %v373
    %391 = vmatpush1.bf16.msra.mxu0 %v372
    %392 = vmatprep.subr.bf16.mxu0 %v371
    %393 = vmatpush1.bf16.msra.mxu0 %v370
    %394 = vmatprep.subr.bf16.mxu0 %v369
    %395 = vmatpush1.bf16.msra.mxu0 %v368
    %396 = vmatprep.subr.bf16.mxu0 %v367
    %397 = vmatpush1.bf16.msra.mxu0 %v366
    %398 = vmatprep.subr.bf16.mxu0 %v365
    %399 = vmatpush1.bf16.msra.mxu0 %v364
    %400 = vmatprep.subr.bf16.mxu0 %v363
    %401 = vmatpush1.bf16.msra.mxu0 %v362
    %402 = vmatprep.subr.bf16.mxu0 %v361
    %403 = vmatpush1.bf16.msra.mxu0 %v360
    %404 = vmatprep.subr.bf16.mxu0 %v359
    %405 = vmatpush1.bf16.msra.mxu0 %v358
    %406 = vmatprep.subr.bf16.mxu0 0
    %407 = vmatpush2.bf16.msra.mxu0 0
    %408 = vmatprep.subr.bf16.mxu0 0
    %409 = vmatpush2.bf16.msra.mxu0 0
    %410 = vmatprep.subr.bf16.mxu0 0
    %411 = vmatpush2.bf16.msra.mxu0 0
    %412 = vmatprep.subr.bf16.mxu0 0
    %413 = vmatpush2.bf16.msra.mxu0 0
    %414 = vmatprep.subr.bf16.mxu0 0
    %415 = vmatpush2.bf16.msra.mxu0 0
    %416 = vmatprep.subr.bf16.mxu0 0
    %417 = vmatpush2.bf16.msra.mxu0 0
    %418 = vmatprep.subr.bf16.mxu0 0
    %419 = vmatpush2.bf16.msra.mxu0 0
    %420 = vmatprep.subr.bf16.mxu0 0
    %421 = vmatpush2.bf16.msra.mxu0 0
    %422 = vmatprep.mubr.bf16.mxu0 0
    %423 = vmatmul.mubr.bf16.gmra.mxu0 %v302
    %v424 = vpop.f32.mrf.mxu0
    %v425 = vadd.f32 0.0, %v424
    %v426 = vpop.f32.mrf.mxu0
    %v427 = vadd.f32 0.0, %v426
    %v428 = vpop.f32.mrf.mxu0
    %v429 = vadd.f32 0.0, %v428
    %v430 = vpop.f32.mrf.mxu0
    %v431 = vadd.f32 0.0, %v430
    %432 = vmatprep.mubr.bf16.mxu0 0
    %433 = vmatmul.mubr.bf16.gmra.mxu0 %v303
    %v434 = vpop.f32.mrf.mxu0
    %v435 = vadd.f32 0.0, %v434
    %v436 = vpop.f32.mrf.mxu0
    %v437 = vadd.f32 0.0, %v436
    %v438 = vpop.f32.mrf.mxu0
    %v439 = vadd.f32 0.0, %v438
    %v440 = vpop.f32.mrf.mxu0
    %v441 = vadd.f32 0.0, %v440
    %442 = vmatprep.mubr.bf16.mxu0 0
    %443 = vmatmul.mubr.bf16.gmra.mxu0 %v304
    %v444 = vpop.f32.mrf.mxu0
    %v445 = vadd.f32 0.0, %v444
    %v446 = vpop.f32.mrf.mxu0
    %v447 = vadd.f32 0.0, %v446
    %v448 = vpop.f32.mrf.mxu0
    %v449 = vadd.f32 0.0, %v448
    %v450 = vpop.f32.mrf.mxu0
    %v451 = vadd.f32 0.0, %v450
    %452 = vmatprep.mubr.bf16.mxu0 0
    %453 = vmatmul.mubr.bf16.gmra.mxu0 %v305
    %v454 = vpop.f32.mrf.mxu0
    %v455 = vadd.f32 0.0, %v454
    %v456 = vpop.f32.mrf.mxu0
    %v457 = vadd.f32 0.0, %v456
    %v458 = vpop.f32.mrf.mxu0
    %v459 = vadd.f32 0.0, %v458
    %v460 = vpop.f32.mrf.mxu0
    %v461 = vadd.f32 0.0, %v460
    %462 = vdwg.mxu0
    %v463 = vlaneseq
    %v464 = vshrl.u32 %v463, 7
    %v465 = vsub.s32 1, %v464
    %v466 = vrot.slane %v112, %v465
    %v467 = vadd.f32 %v425, %v466
    %v468 = vadd.f32 %v429, %v466
    %v469 = vadd.f32 %v435, %v466
    %v470 = vadd.f32 %v439, %v466
    %v471 = vadd.f32 %v445, %v466
    %v472 = vadd.f32 %v449, %v466
    %v473 = vadd.f32 %v455, %v466
    %v474 = vadd.f32 %v459, %v466
    %v475 = vlaneseq
    %v476 = vshrl.u32 %v475, 7
    %v477 = vsub.s32 2, %v476
    %v478 = vrot.slane %v112, %v477
    %v479 = vadd.f32 %v427, %v478
    %v480 = vadd.f32 %v431, %v478
    %v481 = vadd.f32 %v437, %v478
    %v482 = vadd.f32 %v441, %v478
    %v483 = vadd.f32 %v447, %v478
    %v484 = vadd.f32 %v451, %v478
    %v485 = vadd.f32 %v457, %v478
    %v486 = vadd.f32 %v461, %v478
    %v487 = vmul.f32 %v240, %v467
    %v488 = vmul.f32 %v243, %v468
    %v489 = vmul.f32 %v248, %v469
    %v490 = vmul.f32 %v251, %v470
    %v491 = vmul.f32 %v256, %v471
    %v492 = vmul.f32 %v259, %v472
    %v493 = vmul.f32 %v264, %v473
    %v494 = vmul.f32 %v267, %v474
    %495 = vadd.xlane.f32.xlu0 %v487
    %v496 = vpop.xlane.xlu0 %495
    %497 = vadd.xlane.f32.xlu0 %v488
    %v498 = vpop.xlane.xlu0 %497
    %499 = vadd.xlane.f32.xlu0 %v489
    %v500 = vpop.xlane.xlu0 %499
    %501 = vadd.xlane.f32.xlu0 %v490
    %v502 = vpop.xlane.xlu0 %501
    %503 = vadd.xlane.f32.xlu0 %v491
    %v504 = vpop.xlane.xlu0 %503
    %505 = vadd.xlane.f32.xlu0 %v492
    %v506 = vpop.xlane.xlu0 %505
    %507 = vadd.xlane.f32.xlu0 %v493
    %v508 = vpop.xlane.xlu0 %507
    %509 = vadd.xlane.f32.xlu0 %v494
    %v510 = vpop.xlane.xlu0 %509
    %v511 = vmul.f32 %v496, 0.17677669
    %v512 = vmul.f32 %v498, 0.17677669
    %v513 = vmul.f32 %v500, 0.17677669
    %v514 = vmul.f32 %v502, 0.17677669
    %v515 = vmul.f32 %v504, 0.17677669
    %v516 = vmul.f32 %v506, 0.17677669
    %v517 = vmul.f32 %v508, 0.17677669
    %v518 = vmul.f32 %v510, 0.17677669
    %v519 = vxor.u32 %v511, 2147483648
    %v520 = vxor.u32 %v512, 2147483648
    %v521 = vxor.u32 %v513, 2147483648
    %v522 = vxor.u32 %v514, 2147483648
    %v523 = vxor.u32 %v515, 2147483648
    %v524 = vxor.u32 %v516, 2147483648
    %v525 = vxor.u32 %v517, 2147483648
    %v526 = vxor.u32 %v518, 2147483648
    %v527 = vmul.f32 %v519, 1.442695
    %v528 = vpow.pop %v527
    %v529 = vmul.f32 %v520, 1.442695
    %v530 = vpow.pop %v529
    %v531 = vmul.f32 %v521, 1.442695
    %v532 = vpow.pop %v531
    %v533 = vmul.f32 %v522, 1.442695
    %v534 = vpow.pop %v533
    %v535 = vmul.f32 %v523, 1.442695
    %v536 = vpow.pop %v535
    %v537 = vmul.f32 %v524, 1.442695
    %v538 = vpow.pop %v537
    %v539 = vmul.f32 %v525, 1.442695
    %v540 = vpow.pop %v539
    %v541 = vmul.f32 %v526, 1.442695
    %v542 = vpow.pop %v541
    %v543 = vadd.f32 %v528, 1.0
    %v544 = vadd.f32 %v530, 1.0
    %v545 = vadd.f32 %v532, 1.0
    %v546 = vadd.f32 %v534, 1.0
    %v547 = vadd.f32 %v536, 1.0
    %v548 = vadd.f32 %v538, 1.0
    %v549 = vadd.f32 %v540, 1.0
    %v550 = vadd.f32 %v542, 1.0
    %v551 = vrcp.pop %v543
    %v552 = vmul.f32 1.0, %v551
    %v553 = vrcp.pop %v544
    %v554 = vmul.f32 1.0, %v553
    %v555 = vrcp.pop %v545
    %v556 = vmul.f32 1.0, %v555
    %v557 = vrcp.pop %v546
    %v558 = vmul.f32 1.0, %v557
    %v559 = vrcp.pop %v547
    %v560 = vmul.f32 1.0, %v559
    %v561 = vrcp.pop %v548
    %v562 = vmul.f32 1.0, %v561
    %v563 = vrcp.pop %v549
    %v564 = vmul.f32 1.0, %v563
    %v565 = vrcp.pop %v550
    %v566 = vmul.f32 1.0, %v565
    %v567 = vmul.f32 %v552, %v479
    %v568 = vmul.f32 %v554, %v480
    %v569 = vmul.f32 %v556, %v481
    %v570 = vmul.f32 %v558, %v482
    %v571 = vmul.f32 %v560, %v483
    %v572 = vmul.f32 %v562, %v484
    %v573 = vmul.f32 %v564, %v485
    %v574 = vmul.f32 %v566, %v486
    %v575 = vadd.f32 %v567, %v104
    %v576 = vadd.f32 %v568, %v105
    %v577 = vadd.f32 %v569, %v106
    %v578 = vadd.f32 %v570, %v107
    %v579 = vadd.f32 %v571, %v108
    %v580 = vadd.f32 %v572, %v109
    %v581 = vadd.f32 %v573, %v110
    %v582 = vadd.f32 %v574, %v111
    %583 = vadd.xlane.f32.xlu0 %v575
    %v584 = vpop.xlane.xlu0 %583
    %585 = vadd.xlane.f32.xlu0 %v576
    %v586 = vpop.xlane.xlu0 %585
    %587 = vadd.xlane.f32.xlu0 %v577
    %v588 = vpop.xlane.xlu0 %587
    %589 = vadd.xlane.f32.xlu0 %v578
    %v590 = vpop.xlane.xlu0 %589
    %591 = vadd.xlane.f32.xlu0 %v579
    %v592 = vpop.xlane.xlu0 %591
    %593 = vadd.xlane.f32.xlu0 %v580
    %v594 = vpop.xlane.xlu0 %593
    %595 = vadd.xlane.f32.xlu0 %v581
    %v596 = vpop.xlane.xlu0 %595
    %597 = vadd.xlane.f32.xlu0 %v582
    %v598 = vpop.xlane.xlu0 %597
    %v599 = vmul.f32 %v584, 0.03125
    %v600 = vmul.f32 %v586, 0.03125
    %v601 = vmul.f32 %v588, 0.03125
    %v602 = vmul.f32 %v590, 0.03125
    %v603 = vmul.f32 %v592, 0.03125
    %v604 = vmul.f32 %v594, 0.03125
    %v605 = vmul.f32 %v596, 0.03125
    %v606 = vmul.f32 %v598, 0.03125
    %v607 = vsub.f32 %v575, %v599
    %v608 = vsub.f32 %v576, %v600
    %v609 = vsub.f32 %v577, %v601
    %v610 = vsub.f32 %v578, %v602
    %v611 = vsub.f32 %v579, %v603
    %v612 = vsub.f32 %v580, %v604
    %v613 = vsub.f32 %v581, %v605
    %v614 = vsub.f32 %v582, %v606
    %v615 = vlaneseq
    %v616 = vand.u32 %v615, 127
    %vm617 = vcmp.lt.s32.totalorder %v616, 32
    %v618 = vsel %vm617, %v607, 0.0
    %v619 = vsel %vm617, %v608, 0.0
    %v620 = vsel %vm617, %v609, 0.0
    %v621 = vsel %vm617, %v610, 0.0
    %v622 = vsel %vm617, %v611, 0.0
    %v623 = vsel %vm617, %v612, 0.0
    %v624 = vsel %vm617, %v613, 0.0
    %v625 = vsel %vm617, %v614, 0.0
    %v626 = vmul.f32 %v618, %v618
    %v627 = vmul.f32 %v619, %v619
    %v628 = vmul.f32 %v620, %v620
    %v629 = vmul.f32 %v621, %v621
    %v630 = vmul.f32 %v622, %v622
    %v631 = vmul.f32 %v623, %v623
    %v632 = vmul.f32 %v624, %v624
    %v633 = vmul.f32 %v625, %v625
    %634 = vadd.xlane.f32.xlu0 %v626
    %v635 = vpop.xlane.xlu0 %634
    %636 = vadd.xlane.f32.xlu0 %v627
    %v637 = vpop.xlane.xlu0 %636
    %638 = vadd.xlane.f32.xlu0 %v628
    %v639 = vpop.xlane.xlu0 %638
    %640 = vadd.xlane.f32.xlu0 %v629
    %v641 = vpop.xlane.xlu0 %640
    %642 = vadd.xlane.f32.xlu0 %v630
    %v643 = vpop.xlane.xlu0 %642
    %644 = vadd.xlane.f32.xlu0 %v631
    %v645 = vpop.xlane.xlu0 %644
    %646 = vadd.xlane.f32.xlu0 %v632
    %v647 = vpop.xlane.xlu0 %646
    %648 = vadd.xlane.f32.xlu0 %v633
    %v649 = vpop.xlane.xlu0 %648
    %v650 = vmul.f32 %v635, 0.03125
    %v651 = vmul.f32 %v637, 0.03125
    %v652 = vmul.f32 %v639, 0.03125
    %v653 = vmul.f32 %v641, 0.03125
    %v654 = vmul.f32 %v643, 0.03125
    %v655 = vmul.f32 %v645, 0.03125
    %v656 = vmul.f32 %v647, 0.03125
    %v657 = vmul.f32 %v649, 0.03125
    %v658 = vadd.f32 %v650, 1e-05
    %v659 = vadd.f32 %v651, 1e-05
    %v660 = vadd.f32 %v652, 1e-05
    %v661 = vadd.f32 %v653, 1e-05
    %v662 = vadd.f32 %v654, 1e-05
    %v663 = vadd.f32 %v655, 1e-05
    %v664 = vadd.f32 %v656, 1e-05
    %v665 = vadd.f32 %v657, 1e-05
    %v666 = vrsqrt.pop %v658
    %v667 = vrsqrt.pop %v659
    %v668 = vrsqrt.pop %v660
    %v669 = vrsqrt.pop %v661
    %v670 = vrsqrt.pop %v662
    %v671 = vrsqrt.pop %v663
    %v672 = vrsqrt.pop %v664
    %v673 = vrsqrt.pop %v665
    %v674 = vmul.f32 %v618, %v666
    %v675 = vmul.f32 %v619, %v667
    %v676 = vmul.f32 %v620, %v668
    %v677 = vmul.f32 %v621, %v669
    %v678 = vmul.f32 %v622, %v670
    %v679 = vmul.f32 %v623, %v671
    %v680 = vmul.f32 %v624, %v672
    %v681 = vmul.f32 %v625, %v673
    %v682 = vlaneseq
    %v683 = vshrl.u32 %v682, 7
    %v684 = vsub.s32 3, %v683
    %v685 = vrot.slane %v112, %v684
    %v686 = vmul.f32 %v674, %v685
    %v687 = vmul.f32 %v675, %v685
    %v688 = vmul.f32 %v676, %v685
    %v689 = vmul.f32 %v677, %v685
    %v690 = vmul.f32 %v678, %v685
    %v691 = vmul.f32 %v679, %v685
    %v692 = vmul.f32 %v680, %v685
    %v693 = vmul.f32 %v681, %v685
    %v694 = vlaneseq
    %v695 = vshrl.u32 %v694, 7
    %v696 = vsub.s32 4, %v695
    %v697 = vrot.slane %v112, %v696
    %v698 = vadd.f32 %v686, %v697
    %v699 = vadd.f32 %v687, %v697
    %v700 = vadd.f32 %v688, %v697
    %v701 = vadd.f32 %v689, %v697
    %v702 = vadd.f32 %v690, %v697
    %v703 = vadd.f32 %v691, %v697
    %v704 = vadd.f32 %v692, %v697
    %v705 = vadd.f32 %v693, %v697
    %706 = vst [vmem:[#allocation11] sm:$0xff] %v698
    %707 = vst [vmem:[#allocation11 + $0x8] sm:$0xff] %v699
    %708 = vst [vmem:[#allocation11 + $0x10] sm:$0xff] %v700
    %709 = vst [vmem:[#allocation11 + $0x18] sm:$0xff] %v701
    %710 = vst [vmem:[#allocation11 + $0x20] sm:$0xff] %v702
    %711 = vst [vmem:[#allocation11 + $0x28] sm:$0xff] %v703
    %712 = vst [vmem:[#allocation11 + $0x30] sm:$0xff] %v704
    %713 = vst [vmem:[#allocation11 + $0x38] sm:$0xff] %v705
    // Predicated region
    $region42: #{tpu_custom_call.1} parent=1 // pred_check
      _
    $region43: #{tpu_custom_call.1} parent=1 // pred_check_branch
      %715 = sbr.rel (0) target = $region45
    $region44: #{tpu_custom_call.1} parent=1 // pred_region
      %s717 = ssub.s32 1024, 1024
      %718 = vsyncadd [#allocation4], %s717
      %s719 = sshll.u32 [#allocation11], 4
      %s720 = int_to_ptr.vmem [resolvable:$true] %s719
      %725 = dma.vmem_to_hbm [thread:$0]  %s720, 1024, %s5, [#allocation4], 128, 128, 8
    $region45: #{tpu_custom_call.1} parent=1 // pred_fallthru
      _
    // Predicated region
    $region46: #{tpu_custom_call.1} parent=1 // pred_check
      _
    $region47: #{tpu_custom_call.1} parent=1 // pred_check_branch
      %727 = sbr.rel (0) target = $region49
    $region48: #{tpu_custom_call.1} parent=1 // pred_region
      %728 = dma.done [#allocation4], 1024
    $region49: #{tpu_custom_call.1} parent=1 // pred_fallthru
      _
    %729 = vsyncpa [#allocation3], 1
    %730 = vsyncpa [#allocation6], 1
    %731 = vsyncpa [#allocation9], 1
    %732 = vsyncpa [#allocation4], 1

</llo_original>
